<compile_context>
chip_gen: v7x
topology: tpu7x:2x2x1
jax: 0.10.0
libtpu: 0.0.40
codegen_flags: <defaults>
</compile_context>

<pallas_src>
import numpy as np
import jax
import jax.numpy as jnp
from jax.experimental import pallas as pl
from jax.experimental.pallas import tpu as pltpu


# ----------------------------------------------------------------------------
# Helpers
# ----------------------------------------------------------------------------
def _round_up(n, m):
    return ((n + m - 1) // m) * m


def _maybe_vmem_limit(resident_bytes):
    # Guard the "all weights resident" design before shapes grow; dead at demo
    # shapes. Leaves headroom below the 64 MiB v7x physical VMEM.
    if resident_bytes > (16 << 20):
        return min(int(resident_bytes * 2) + (4 << 20), 100 << 20)
    return None


# ----------------------------------------------------------------------------
# Fused HyperNet forward kernel (structure-only closure; no float baking)
# ----------------------------------------------------------------------------
def _make_hypernet_kernel(n_layers, hyper_bias):
    """Ref order: x, z, [W_cat, b_cat] * n_layers, head_W, (head_b), out.

    All weights are pre-transposed / concatenated / block-diagonal / pre-scaled
    at pack time, so the kernel is: MLP (one dot+bias+relu per layer), one head
    dot (+bias), one elementwise mul, one lane reduce.
    """

    def kernel(*refs):
        pos = 2
        h = refs[0][...]                       # x  (both MLPs share it)
        for _ in range(n_layers):
            wt = refs[pos][...]
            b = refs[pos + 1][...]
            pos += 2
            h = jnp.maximum(
                jnp.dot(h, wt, preferred_element_type=jnp.float32) + b, 0.0)

        theta = jnp.dot(refs[1][...], refs[pos][...],
                        preferred_element_type=jnp.float32)
        pos += 1
        if hyper_bias:
            theta = theta + refs[pos][...]
            pos += 1

        o_ref = refs[pos]
        o_ref[...] = jnp.sum(h * theta, axis=-1, keepdims=True).astype(o_ref.dtype)

    return kernel


# ----------------------------------------------------------------------------
# Parameter init (mirrors the PyTorch module's default inits, deterministic JAX RNG)
# ----------------------------------------------------------------------------
def init_hypernet_params(key, in_features, hidden_sizes, noise_dim,
                         prior_std=1.0, hyper_bias=True):
    params = {"base": [], "prior": []}
    dims = [in_features] + list(hidden_sizes)

    # basedmodel / priormodel: nn.Linear default init
    # (kaiming_uniform(a=sqrt(5)) -> U(-1/sqrt(fan_in), 1/sqrt(fan_in)))
    for i in range(1, len(dims)):
        fan_in, fan_out = dims[i - 1], dims[i]
        bound = 1.0 / np.sqrt(fan_in)
        for name in ("base", "prior"):
            key, kw, kb = jax.random.split(key, 3)
            W = jax.random.uniform(kw, (fan_out, fan_in), jnp.float32,
                                   minval=-bound, maxval=bound)
            b = jax.random.uniform(kb, (fan_out,), jnp.float32,
                                   minval=-bound, maxval=bound)
            params[name].append((W, b))

    hyper_out = in_features if len(hidden_sizes) == 0 else hidden_sizes[-1]

    # hyper_weight: HyperLayer(weight_init='xavier_normal', bias_init='sphere-sphere')
    key, kw, kb = jax.random.split(key, 3)
    std = np.sqrt(2.0 / (noise_dim + hyper_out))
    Wh = std * jax.random.normal(kw, (hyper_out, noise_dim), jnp.float32)
    if hyper_bias:
        bh = jax.random.normal(kb, (hyper_out,), jnp.float32)
        bh = prior_std * bh / jnp.linalg.norm(bh)
    else:
        bh = None

    # prior_weight: HyperLayer(weight_init='sDB', bias_init='sphere-sphere', frozen)
    key, kw, kb = jax.random.split(key, 3)
    Wq = jax.random.normal(kw, (hyper_out, noise_dim), jnp.float32)
    Wq = prior_std * Wq / jnp.linalg.norm(Wq, axis=1, keepdims=True)
    if hyper_bias:
        bq = jax.random.normal(kb, (hyper_out,), jnp.float32)
        bq = prior_std * bq / jnp.linalg.norm(bq)
    else:
        bq = None

    params["hyper_W"], params["hyper_b"] = Wh, bh
    params["prior_head_W"], params["prior_head_b"] = Wq, bq
    return params


# ----------------------------------------------------------------------------
# One-time packing: fuse base+prior (concat-N / block-diagonal), pre-transpose,
# lane-pad each half to a multiple of 128, and fold the scales into the heads.
# ----------------------------------------------------------------------------
def pack_hypernet_params(params, *, posterior_scale=1.0, prior_scale=1.0):
    packed = []
    matmul_dims = []          # (K, N) per fused matmul, for the cost estimate
    base, prior = params["base"], params["prior"]
    n_layers = len(base)
    ps, prs = float(posterior_scale), float(prior_scale)

    pads = [_round_up(W.shape[0], 128) for (W, _) in base]   # per-layer padded out-dim

    for i in range(n_layers):
        Wb, bb = base[i]
        Wp, bp = prior[i]
        out_f, in_f = Wb.shape
        n_pad = pads[i]
        if i == 0:
            # Both paths share the same input x -> concatenate along N.
            K = in_f
            Wt = jnp.zeros((K, 2 * n_pad), jnp.float32)
            Wt = Wt.at[:in_f, :out_f].set(Wb.T)
            Wt = Wt.at[:in_f, n_pad:n_pad + out_f].set(Wp.T)
        else:
            # Inputs are already [h_base | h_prior] -> block-diagonal weight.
            k_pad = pads[i - 1]
            K = 2 * k_pad
            Wt = jnp.zeros((K, 2 * n_pad), jnp.float32)
            Wt = Wt.at[:in_f, :out_f].set(Wb.T)
            Wt = Wt.at[k_pad:k_pad + in_f, n_pad:n_pad + out_f].set(Wp.T)
        b_cat = jnp.zeros((1, 2 * n_pad), jnp.float32)
        b_cat = b_cat.at[0, :out_f].set(bb)
        b_cat = b_cat.at[0, n_pad:n_pad + out_f].set(bp)
        packed += [Wt, b_cat]
        matmul_dims.append((K, 2 * n_pad))

    Wh, bh = params["hyper_W"], params["hyper_b"]
    Wq, bq = params["prior_head_W"], params["prior_head_b"]
    out_f, noise_dim = Wh.shape

    if n_layers == 0:
        # logits == prior_logits == x, so the two heads collapse into one:
        #   out = sum(x * (ps*theta + prs*prior_theta), -1)
        W_comb = ps * Wh + prs * Wq
        packed.append(jnp.asarray(W_comb.T, jnp.float32))         # (noise_dim, out_f)
        matmul_dims.append((noise_dim, out_f))
        if bh is not None:
            b_comb = (ps * bh + prs * bq).reshape(1, -1)
            packed.append(jnp.asarray(b_comb, jnp.float32))
        head_width = out_f
    else:
        n_pad = pads[-1]
        W_head = jnp.zeros((noise_dim, 2 * n_pad), jnp.float32)
        W_head = W_head.at[:, :out_f].set(ps * Wh.T)
        W_head = W_head.at[:, n_pad:n_pad + out_f].set(prs * Wq.T)
        packed.append(W_head)
        matmul_dims.append((noise_dim, 2 * n_pad))
        if bh is not None:
            b_head = jnp.zeros((1, 2 * n_pad), jnp.float32)
            b_head = b_head.at[0, :out_f].set(ps * bh)
            b_head = b_head.at[0, n_pad:n_pad + out_f].set(prs * bq)
            packed.append(b_head)
        head_width = 2 * n_pad

    meta = dict(n_layers=n_layers,
                hyper_bias=bh is not None,
                matmul_dims=tuple(matmul_dims),
                head_width=head_width)
    return packed, meta


def _cost_estimate(meta, rows, inputs):
    flops = sum(2 * rows * K * N for (K, N) in meta["matmul_dims"])
    bytes_accessed = sum(int(np.prod(a.shape)) * a.dtype.itemsize
                         for a in inputs) + rows * 4
    return pl.CostEstimate(flops=flops, transcendentals=0,
                           bytes_accessed=bytes_accessed), bytes_accessed


# ----------------------------------------------------------------------------
# Small-batch forward: grid-less, everything resident in VMEM, zero wrapper ops.
# ----------------------------------------------------------------------------
def hypernet_forward(packed, meta, z, x):
    """Fused Pallas HyperNet.forward(z, x) -> (B,)."""
    B = x.shape[0]
    inputs = [x.astype(jnp.float32), z.astype(jnp.float32)] + list(packed)
    kernel = _make_hypernet_kernel(meta["n_layers"], meta["hyper_bias"])
    cost, resident = _cost_estimate(meta, B, inputs)

    call_kwargs = {}
    limit = _maybe_vmem_limit(resident)
    if limit is not None:
        call_kwargs["compiler_params"] = pltpu.CompilerParams(vmem_limit_bytes=limit)

    out = pl.pallas_call(
        kernel,
        out_shape=jax.ShapeDtypeStruct((B, 1), jnp.float32),
        in_specs=[pl.BlockSpec(memory_space=pltpu.MemorySpace.VMEM)] * len(inputs),
        out_specs=pl.BlockSpec(memory_space=pltpu.MemorySpace.VMEM),
        cost_estimate=cost,
        **call_kwargs,
    )(*inputs)
    return out[:, 0]


# ----------------------------------------------------------------------------
# Large-batch forward: tile the batch over a 'parallel' grid axis (fills the
# MXU M dimension; uses both TensorCores on v7x). Weights stay resident (their
# block index is constant across the grid).
# ----------------------------------------------------------------------------
def hypernet_forward_batched(packed, meta, z, x, *, tile_b=128):
    B = x.shape[0]
    n_tiles = pl.cdiv(B, tile_b)
    B_pad = n_tiles * tile_b
    x = x.astype(jnp.float32)
    z = z.astype(jnp.float32)
    if B_pad != B:   # only the tail tile ever gets padded
        x = jnp.pad(x, ((0, B_pad - B), (0, 0)))
        z = jnp.pad(z, ((0, B_pad - B), (0, 0)))

    kernel = _make_hypernet_kernel(meta["n_layers"], meta["hyper_bias"])
    inputs = [x, z] + list(packed)
    cost, resident = _cost_estimate(meta, B_pad, inputs)

    in_specs = [pl.BlockSpec((tile_b, x.shape[1]), lambda i: (i, 0)),
                pl.BlockSpec((tile_b, z.shape[1]), lambda i: (i, 0))]
    in_specs += [pl.BlockSpec(a.shape, lambda i: (0, 0)) for a in packed]
    out_specs = pl.BlockSpec((tile_b, 1), lambda i: (i, 0))

    cp_kwargs = dict(dimension_semantics=("parallel",))
    limit = _maybe_vmem_limit(resident)
    if limit is not None:
        cp_kwargs["vmem_limit_bytes"] = limit

    out = pl.pallas_call(
        kernel,
        out_shape=jax.ShapeDtypeStruct((B_pad, 1), jnp.float32),
        grid=(n_tiles,),
        in_specs=in_specs,
        out_specs=out_specs,
        compiler_params=pltpu.CompilerParams(**cp_kwargs),
        cost_estimate=cost,
    )(*inputs)
    return out[:B, 0]


# ----------------------------------------------------------------------------
# Pure-JAX reference (same math as the PyTorch module)
# ----------------------------------------------------------------------------
def hypernet_reference(params, z, x, posterior_scale=1.0, prior_scale=1.0):
    h = x
    for (W, b) in params["base"]:
        h = jnp.maximum(h @ W.T + b, 0.0)
    hp = x
    for (W, b) in params["prior"]:
        hp = jnp.maximum(hp @ W.T + b, 0.0)
    theta = z @ params["hyper_W"].T
    ptheta = z @ params["prior_head_W"].T
    if params["hyper_b"] is not None:
        theta = theta + params["hyper_b"]
        ptheta = ptheta + params["prior_head_b"]
    return (posterior_scale * jnp.sum(h * theta, axis=-1)
            + prior_scale * jnp.sum(hp * ptheta, axis=-1))


# ----------------------------------------------------------------------------
# Demo / correctness check
# ----------------------------------------------------------------------------
if __name__ == "__main__":
    in_features = 16
    hidden_sizes = (32, 32)   # >1 layer exercises the block-diagonal packing
    noise_dim = 8
    prior_std = 1.0
    prior_scale = 0.5
    posterior_scale = 1.5
    hyper_bias = True

    key = jax.random.PRNGKey(0)
    k_param, k_x, k_z, k_xb, k_zb = jax.random.split(key, 5)

    params = init_hypernet_params(k_param, in_features, hidden_sizes, noise_dim,
                                  prior_std=prior_std, hyper_bias=hyper_bias)
    packed, meta = pack_hypernet_params(params,
                                        posterior_scale=posterior_scale,
                                        prior_scale=prior_scale)

    # --- small batch: grid-less fully-resident path ---
    batch = 2
    x = jax.random.normal(k_x, (batch, in_features), dtype=jnp.float32)
    z = jax.random.normal(k_z, (batch, noise_dim), dtype=jnp.float32)
    out = jax.block_until_ready(hypernet_forward(packed, meta, z, x))
    ref = hypernet_reference(params, z, x, posterior_scale, prior_scale)
    np.testing.assert_allclose(np.asarray(out), np.asarray(ref),
                               rtol=1e-5, atol=1e-5)

    # --- large batch (ensemble of z samples): parallel-gridded path ---
    big = 300
    xb = jax.random.normal(k_xb, (big, in_features), dtype=jnp.float32)
    zb = jax.random.normal(k_zb, (big, noise_dim), dtype=jnp.float32)
    outb = jax.block_until_ready(
        hypernet_forward_batched(packed, meta, zb, xb, tile_b=128))
    refb = hypernet_reference(params, zb, xb, posterior_scale, prior_scale)
    np.testing.assert_allclose(np.asarray(outb), np.asarray(refb),
                               rtol=1e-5, atol=1e-5)

    print("KERNEL_OK")
</pallas_src>

<mosaic_0001>
module attributes {stable_mosaic.version = 11 : i64} {
  func.func @kernel(%arg0: memref<2x16xf32, #tpu.memory_space<vmem>>, %arg1: memref<2x8xf32, #tpu.memory_space<vmem>>, %arg2: memref<16x256xf32, #tpu.memory_space<vmem>>, %arg3: memref<1x256xf32, #tpu.memory_space<vmem>>, %arg4: memref<256x256xf32, #tpu.memory_space<vmem>>, %arg5: memref<1x256xf32, #tpu.memory_space<vmem>>, %arg6: memref<8x256xf32, #tpu.memory_space<vmem>>, %arg7: memref<1x256xf32, #tpu.memory_space<vmem>>, %arg8: memref<2x1xf32, #tpu.memory_space<vmem>>) attributes {dimension_semantics = [], scalar_prefetch = 0 : i64, scratch_operands = 0 : i64, tpu.core_type = #tpu.core_type<tc>} {
    %c0 = arith.constant 0 : index
    %c0_0 = arith.constant 0 : index
    %0 = vector.load %arg0[%c0, %c0_0] : memref<2x16xf32, #tpu.memory_space<vmem>>, vector<2x16xf32>
    %c0_1 = arith.constant 0 : index
    %c0_2 = arith.constant 0 : index
    %1 = vector.load %arg2[%c0_1, %c0_2] : memref<16x256xf32, #tpu.memory_space<vmem>>, vector<16x256xf32>
    %c0_3 = arith.constant 0 : index
    %c0_4 = arith.constant 0 : index
    %2 = vector.load %arg3[%c0_3, %c0_4] : memref<1x256xf32, #tpu.memory_space<vmem>>, vector<1x256xf32>
    %cst = arith.constant dense<0.000000e+00> : vector<2x256xf32>
    %3 = tpu.matmul %0, %1, %cst {dimension_numbers = #tpu.dot_dimension_numbers<[1], [0], [0], [1], [0, 0, 1, 1], [], []>} : vector<2x16xf32>, vector<16x256xf32>, vector<2x256xf32> -> vector<2x256xf32>
    %4 = vector.broadcast %2 : vector<1x256xf32> to vector<2x256xf32>
    %5 = arith.addf %3, %4 : vector<2x256xf32>
    %cst_5 = arith.constant 0.000000e+00 : f32
    %6 = vector.broadcast %cst_5 : f32 to vector<2x256xf32>
    %7 = arith.maximumf %5, %6 : vector<2x256xf32>
    %c0_6 = arith.constant 0 : index
    %c0_7 = arith.constant 0 : index
    %8 = vector.load %arg4[%c0_6, %c0_7] : memref<256x256xf32, #tpu.memory_space<vmem>>, vector<256x256xf32>
    %c0_8 = arith.constant 0 : index
    %c0_9 = arith.constant 0 : index
    %9 = vector.load %arg5[%c0_8, %c0_9] : memref<1x256xf32, #tpu.memory_space<vmem>>, vector<1x256xf32>
    %cst_10 = arith.constant dense<0.000000e+00> : vector<2x256xf32>
    %10 = tpu.matmul %7, %8, %cst_10 {dimension_numbers = #tpu.dot_dimension_numbers<[1], [0], [0], [1], [0, 0, 1, 1], [], []>} : vector<2x256xf32>, vector<256x256xf32>, vector<2x256xf32> -> vector<2x256xf32>
    %11 = vector.broadcast %9 : vector<1x256xf32> to vector<2x256xf32>
    %12 = arith.addf %10, %11 : vector<2x256xf32>
    %cst_11 = arith.constant 0.000000e+00 : f32
    %13 = vector.broadcast %cst_11 : f32 to vector<2x256xf32>
    %14 = arith.maximumf %12, %13 : vector<2x256xf32>
    %c0_12 = arith.constant 0 : index
    %c0_13 = arith.constant 0 : index
    %15 = vector.load %arg1[%c0_12, %c0_13] : memref<2x8xf32, #tpu.memory_space<vmem>>, vector<2x8xf32>
    %c0_14 = arith.constant 0 : index
    %c0_15 = arith.constant 0 : index
    %16 = vector.load %arg6[%c0_14, %c0_15] : memref<8x256xf32, #tpu.memory_space<vmem>>, vector<8x256xf32>
    %cst_16 = arith.constant dense<0.000000e+00> : vector<2x256xf32>
    %17 = tpu.matmul %15, %16, %cst_16 {dimension_numbers = #tpu.dot_dimension_numbers<[1], [0], [0], [1], [0, 0, 1, 1], [], []>} : vector<2x8xf32>, vector<8x256xf32>, vector<2x256xf32> -> vector<2x256xf32>
    %c0_17 = arith.constant 0 : index
    %c0_18 = arith.constant 0 : index
    %18 = vector.load %arg7[%c0_17, %c0_18] : memref<1x256xf32, #tpu.memory_space<vmem>>, vector<1x256xf32>
    %19 = vector.broadcast %18 : vector<1x256xf32> to vector<2x256xf32>
    %20 = arith.addf %17, %19 : vector<2x256xf32>
    %21 = arith.mulf %14, %20 : vector<2x256xf32>
    %cst_19 = arith.constant dense<0.000000e+00> : vector<2xf32>
    %22 = vector.multi_reduction <add>, %21, %cst_19 [1] : vector<2x256xf32> to vector<2xf32>
    %23 = vector.shape_cast %22 : vector<2xf32> to vector<2x1xf32>
    %c0_20 = arith.constant 0 : index
    %c0_21 = arith.constant 0 : index
    %24 = vector.load %arg8[%c0_20, %c0_21] : memref<2x1xf32, #tpu.memory_space<vmem>>, vector<2x1xf32>
    tpu.vector_store %arg8[%c0_20, %c0_21], %23 {strides = array<i32>} : memref<2x1xf32, #tpu.memory_space<vmem>>, vector<2x1xf32>,
    return
  }
}

</mosaic_0001>

<llo_original>
// kernel: tpu_custom_call.1
$region0: #{tpu_custom_call.1}
  #allocation0 [shape = 'u32[]', space=smem, size = 0x4, offset = 0x4, fixed_abs, tag = 'smem constant byte address 0x4 - core index']
  #allocation1 [shape = 'u32[144,128]{1,0:T(1,128)}', space=vmem, size = 0x12000, scoped, tag = 'internal scratch']
  %s0 = inlined_call_operand.hbm [shape: f32[2,16], index: 0, kind: input, shape index: {}]
  %s1 = inlined_call_operand.vmem [shape: f32[2,8], index: 1, kind: input, shape index: {}]
  %s2 = inlined_call_operand.hbm [shape: f32[16,256], index: 2, kind: input, shape index: {}]
  %s3 = inlined_call_operand.vmem [shape: f32[1,256], index: 3, kind: input, shape index: {}]
  %s4 = inlined_call_operand.hbm [shape: f32[256,256], index: 4, kind: input, shape index: {}]
  %s5 = inlined_call_operand.vmem [shape: f32[1,256], index: 5, kind: input, shape index: {}]
  %s6 = inlined_call_operand.vmem [shape: f32[8,256], index: 6, kind: input, shape index: {}]
  %s7 = inlined_call_operand.vmem [shape: f32[1,256], index: 7, kind: input, shape index: {}]
  %s8 = inlined_call_operand.vmem [shape: f32[2,1], index: 8, kind: output, shape index: {}]
  %s9 = sld [smem:[#allocation0]]
  $region54: #{tpu_custom_call.1} parent=0
    _
  %s11 = ssub.s32 1, %s9
  %s12 = scalar_select 0, %s11, %s9
  $region1: #{tpu_custom_call.1} parent=0
    #allocation2 [shape = 'u8[1024]{0}', space=vmem, size = 0x400, scoped, tag = 'input window, operand 0, single buffered']
    #allocation3 [shape = 's32[1]{0}', space=sflag, size = 0x4, scoped, tag = 'scoped memory for tpu_custom_call.1']
    #allocation4 [shape = 'u8[16384]{0}', space=vmem, size = 0x4000, scoped, tag = 'input window, operand 2, single buffered']
    #allocation5 [shape = 's32[1]{0}', space=sflag, size = 0x4, scoped, tag = 'scoped memory for tpu_custom_call.1']
    #allocation6 [shape = 'u8[262144]{0}', space=vmem, size = 0x40000, scoped, tag = 'input window, operand 4, single buffered']
    %13 = vsyncpa [#allocation3], 0
    %14 = vsyncpa [#allocation5], 0
    // Predicated region
    $region2: #{tpu_custom_call.1} parent=1 // pred_check
      _
    $region3: #{tpu_custom_call.1} parent=1 // pred_check_branch
      %16 = sbr.rel (0) target = $region5
    $region4: #{tpu_custom_call.1} parent=1 // pred_region
      %s18 = ssub.s32 32, 32
      %19 = vsyncadd [#allocation3], %s18
      %s21 = sshll.u32 [#allocation2], 4
      %s22 = int_to_ptr.vmem [resolvable:$true] %s21
      %24 = dma.hbm_to_vmem [thread:$0]  %s0, 32, %s22, [#allocation3]
    $region5: #{tpu_custom_call.1} parent=1 // pred_fallthru
      _
    // Predicated region
    $region6: #{tpu_custom_call.1} parent=1 // pred_check
      _
    $region7: #{tpu_custom_call.1} parent=1 // pred_check_branch
      %26 = sbr.rel (0) target = $region9
    $region8: #{tpu_custom_call.1} parent=1 // pred_region
      _
    $region9: #{tpu_custom_call.1} parent=1 // pred_fallthru
      _
    // Predicated region
    $region10: #{tpu_custom_call.1} parent=1 // pred_check
      _
    $region11: #{tpu_custom_call.1} parent=1 // pred_check_branch
      %28 = sbr.rel (0) target = $region13
    $region12: #{tpu_custom_call.1} parent=1 // pred_region
      %s30 = ssub.s32 512, 512
      %31 = vsyncadd [#allocation5], %s30
      %s32 = sshll.u32 [#allocation4], 4
      %s33 = int_to_ptr.vmem [resolvable:$true] %s32
      %38 = dma.hbm_to_vmem [thread:$0]  %s2, 512, %s33, [#allocation5], 256, 256, 16
    $region13: #{tpu_custom_call.1} parent=1 // pred_fallthru
      _
    // Predicated region
    $region14: #{tpu_custom_call.1} parent=1 // pred_check
      _
    $region15: #{tpu_custom_call.1} parent=1 // pred_check_branch
      %40 = sbr.rel (0) target = $region17
    $region16: #{tpu_custom_call.1} parent=1 // pred_region
      _
    $region17: #{tpu_custom_call.1} parent=1 // pred_fallthru
      _
    // Predicated region
    $region18: #{tpu_custom_call.1} parent=1 // pred_check
      _
    $region19: #{tpu_custom_call.1} parent=1 // pred_check_branch
      %42 = sbr.rel (0) target = $region21
    $region20: #{tpu_custom_call.1} parent=1 // pred_region
      %s44 = ssub.s32 8192, 8192
      %45 = vsyncadd [#allocation5], %s44
      %s46 = sshll.u32 [#allocation6], 4
      %s47 = int_to_ptr.vmem [resolvable:$true] %s46
      %52 = dma.hbm_to_vmem [thread:$0]  %s4, 8192, %s47, [#allocation5], 256, 256, 16
    $region21: #{tpu_custom_call.1} parent=1 // pred_fallthru
      _
    // Predicated region
    $region22: #{tpu_custom_call.1} parent=1 // pred_check
      _
    $region23: #{tpu_custom_call.1} parent=1 // pred_check_branch
      %54 = sbr.rel (0) target = $region25
    $region24: #{tpu_custom_call.1} parent=1 // pred_region
      _
    $region25: #{tpu_custom_call.1} parent=1 // pred_fallthru
      _
    // Predicated region
    $region26: #{tpu_custom_call.1} parent=1 // pred_check
      _
    $region27: #{tpu_custom_call.1} parent=1 // pred_check_branch
      %56 = sbr.rel (0) target = $region29
    $region28: #{tpu_custom_call.1} parent=1 // pred_region
      _
    $region29: #{tpu_custom_call.1} parent=1 // pred_fallthru
      _
    // Predicated region
    $region30: #{tpu_custom_call.1} parent=1 // pred_check
      _
    $region31: #{tpu_custom_call.1} parent=1 // pred_check_branch
      %58 = sbr.rel (0) target = $region33
    $region32: #{tpu_custom_call.1} parent=1 // pred_region
      _
    $region33: #{tpu_custom_call.1} parent=1 // pred_fallthru
      _
    // Predicated region
    $region34: #{tpu_custom_call.1} parent=1 // pred_check
      _
    $region35: #{tpu_custom_call.1} parent=1 // pred_check_branch
      %60 = sbr.rel (0) target = $region37
    $region36: #{tpu_custom_call.1} parent=1 // pred_region
      %61 = dma.done [#allocation3], 32
    $region37: #{tpu_custom_call.1} parent=1 // pred_fallthru
      _
    // Predicated region
    $region38: #{tpu_custom_call.1} parent=1 // pred_check
      _
    $region39: #{tpu_custom_call.1} parent=1 // pred_check_branch
      %63 = sbr.rel (0) target = $region41
    $region40: #{tpu_custom_call.1} parent=1 // pred_region
      %64 = dma.done [#allocation5], 512
    $region41: #{tpu_custom_call.1} parent=1 // pred_fallthru
      _
    // Predicated region
    $region42: #{tpu_custom_call.1} parent=1 // pred_check
      _
    $region43: #{tpu_custom_call.1} parent=1 // pred_check_branch
      %66 = sbr.rel (0) target = $region45
    $region44: #{tpu_custom_call.1} parent=1 // pred_region
      %67 = dma.done [#allocation5], 8192
    $region45: #{tpu_custom_call.1} parent=1 // pred_fallthru
      _
    %v68 = vld [vmem:[#allocation2] sm:$0x3]
    %v69 = vld [vmem:[#allocation4] sm:$0xff]
    %v70 = vld [vmem:[#allocation4 + $0x8] sm:$0xff]
    %v71 = vld [vmem:[#allocation4 + $0x10] sm:$0xff]
    %v72 = vld [vmem:[#allocation4 + $0x18] sm:$0xff]
    %v73 = vld [vmem:[%s3] sm:$0x3]
    %v75 = vlaneseq
    %v76 = vshrl.u32 %v75, 7
    %v77 = vsub.s32 0, %v76
    %v78 = vrot.slane %v73, %v77
    %v79 = vlaneseq
    %v80 = vshrl.u32 %v79, 7
    %v81 = vsub.s32 1, %v80
    %v82 = vrot.slane %v73, %v81
    %vm85 = vcmask 130048
    %v87 = vsel %vm85, %v68, 0
    %89 = vmatprep.subr.mxu0 %v70
    %90 = vmatpush1.msra.mxu0 %v69
    %91 = vmatprep.subr.mxu0 %v72
    %92 = vmatpush1.msra.mxu0 %v71
    %93 = vmatprep.subr.mxu0 0.0
    %94 = vmatpush1.msra.mxu0 0.0
    %95 = vmatprep.subr.mxu0 0.0
    %96 = vmatpush1.msra.mxu0 0.0
    %97 = vmatprep.subr.mxu0 0.0
    %98 = vmatpush1.msra.mxu0 0.0
    %99 = vmatprep.subr.mxu0 0.0
    %100 = vmatpush1.msra.mxu0 0.0
    %101 = vmatprep.subr.mxu0 0.0
    %102 = vmatpush1.msra.mxu0 0.0
    %103 = vmatprep.subr.mxu0 0.0
    %104 = vmatpush1.msra.mxu0 0.0
    %105 = vmatprep.subr.mxu0 0.0
    %106 = vmatpush1.msra.mxu0 0.0
    %107 = vmatprep.subr.mxu0 0.0
    %108 = vmatpush1.msra.mxu0 0.0
    %109 = vmatprep.subr.mxu0 0.0
    %110 = vmatpush1.msra.mxu0 0.0
    %111 = vmatprep.subr.mxu0 0.0
    %112 = vmatpush1.msra.mxu0 0.0
    %113 = vmatprep.subr.mxu0 0.0
    %114 = vmatpush1.msra.mxu0 0.0
    %115 = vmatprep.subr.mxu0 0.0
    %116 = vmatpush1.msra.mxu0 0.0
    %117 = vmatprep.subr.mxu0 0.0
    %118 = vmatpush1.msra.mxu0 0.0
    %119 = vmatprep.subr.mxu0 0.0
    %120 = vmatpush1.msra.mxu0 0.0
    %121 = vmatprep.subr.mxu0 0.0
    %122 = vmatpush1.msra.mxu0 0.0
    %123 = vmatprep.subr.mxu0 0.0
    %124 = vmatpush1.msra.mxu0 0.0
    %125 = vmatprep.subr.mxu0 0.0
    %126 = vmatpush1.msra.mxu0 0.0
    %127 = vmatprep.subr.mxu0 0.0
    %128 = vmatpush1.msra.mxu0 0.0
    %129 = vmatprep.subr.mxu0 0.0
    %130 = vmatpush1.msra.mxu0 0.0
    %131 = vmatprep.subr.mxu0 0.0
    %132 = vmatpush1.msra.mxu0 0.0
    %133 = vmatprep.subr.mxu0 0.0
    %134 = vmatpush1.msra.mxu0 0.0
    %135 = vmatprep.subr.mxu0 0.0
    %136 = vmatpush1.msra.mxu0 0.0
    %137 = vmatprep.subr.mxu0 0.0
    %138 = vmatpush1.msra.mxu0 0.0
    %139 = vmatprep.subr.mxu0 0.0
    %140 = vmatpush1.msra.mxu0 0.0
    %141 = vmatprep.subr.mxu0 0.0
    %142 = vmatpush1.msra.mxu0 0.0
    %143 = vmatprep.subr.mxu0 0.0
    %144 = vmatpush1.msra.mxu0 0.0
    %145 = vmatprep.subr.mxu0 0.0
    %146 = vmatpush1.msra.mxu0 0.0
    %147 = vmatprep.subr.mxu0 0.0
    %148 = vmatpush1.msra.mxu0 0.0
    %149 = vmatprep.subr.mxu0 0.0
    %150 = vmatpush1.msra.mxu0 0.0
    %151 = vmatprep.subr.mxu0 0.0
    %152 = vmatpush1.msra.mxu0 0.0
    %153 = vmatprep.mubr.f32.mxu0 0.0
    %154 = vmatmul.mubr.f32.gmra.mrb[0].mxu0 %v87
    %v155 = vpop.f32.mrb[0].mxu0
    %v156 = vadd.f32 %v78, %v155
    %v157 = vpop.f32.mrb[0].mxu0
    %v158 = vadd.f32 %v82, %v157
    %159 = vdwg.mxu0
    %v160 = vmax.f32 %v156, 0.0
    %v161 = vmax.f32 %v158, 0.0
    %v162 = vld [vmem:[#allocation6] sm:$0xff]
    %v163 = vld [vmem:[#allocation6 + $0x8] sm:$0xff]
    %v164 = vld [vmem:[#allocation6 + $0x10] sm:$0xff]
    %v165 = vld [vmem:[#allocation6 + $0x18] sm:$0xff]
    %v166 = vld [vmem:[#allocation6 + $0x20] sm:$0xff]
    %v167 = vld [vmem:[#allocation6 + $0x28] sm:$0xff]
    %v168 = vld [vmem:[#allocation6 + $0x30] sm:$0xff]
    %v169 = vld [vmem:[#allocation6 + $0x38] sm:$0xff]
    %v170 = vld [vmem:[#allocation6 + $0x40] sm:$0xff]
    %v171 = vld [vmem:[#allocation6 + $0x48] sm:$0xff]
    %v172 = vld [vmem:[#allocation6 + $0x50] sm:$0xff]
    %v173 = vld [vmem:[#allocation6 + $0x58] sm:$0xff]
    %v174 = vld [vmem:[#allocation6 + $0x60] sm:$0xff]
    %v175 = vld [vmem:[#allocation6 + $0x68] sm:$0xff]
    %v176 = vld [vmem:[#allocation6 + $0x70] sm:$0xff]
    %v177 = vld [vmem:[#allocation6 + $0x78] sm:$0xff]
    %v178 = vld [vmem:[#allocation6 + $0x80] sm:$0xff]
    %v179 = vld [vmem:[#allocation6 + $0x88] sm:$0xff]
    %v180 = vld [vmem:[#allocation6 + $0x90] sm:$0xff]
    %v181 = vld [vmem:[#allocation6 + $0x98] sm:$0xff]
    %v182 = vld [vmem:[#allocation6 + $0xa0] sm:$0xff]
    %v183 = vld [vmem:[#allocation6 + $0xa8] sm:$0xff]
    %v184 = vld [vmem:[#allocation6 + $0xb0] sm:$0xff]
    %v185 = vld [vmem:[#allocation6 + $0xb8] sm:$0xff]
    %v186 = vld [vmem:[#allocation6 + $0xc0] sm:$0xff]
    %v187 = vld [vmem:[#allocation6 + $0xc8] sm:$0xff]
    %v188 = vld [vmem:[#allocation6 + $0xd0] sm:$0xff]
    %v189 = vld [vmem:[#allocation6 + $0xd8] sm:$0xff]
    %v190 = vld [vmem:[#allocation6 + $0xe0] sm:$0xff]
    %v191 = vld [vmem:[#allocation6 + $0xe8] sm:$0xff]
    %v192 = vld [vmem:[#allocation6 + $0xf0] sm:$0xff]
    %v193 = vld [vmem:[#allocation6 + $0xf8] sm:$0xff]
    %v194 = vld [vmem:[#allocation6 + $0x100] sm:$0xff]
    %v195 = vld [vmem:[#allocation6 + $0x108] sm:$0xff]
    %v196 = vld [vmem:[#allocation6 + $0x110] sm:$0xff]
    %v197 = vld [vmem:[#allocation6 + $0x118] sm:$0xff]
    %v198 = vld [vmem:[#allocation6 + $0x120] sm:$0xff]
    %v199 = vld [vmem:[#allocation6 + $0x128] sm:$0xff]
    %v200 = vld [vmem:[#allocation6 + $0x130] sm:$0xff]
    %v201 = vld [vmem:[#allocation6 + $0x138] sm:$0xff]
    %v202 = vld [vmem:[#allocation6 + $0x140] sm:$0xff]
    %v203 = vld [vmem:[#allocation6 + $0x148] sm:$0xff]
    %v204 = vld [vmem:[#allocation6 + $0x150] sm:$0xff]
    %v205 = vld [vmem:[#allocation6 + $0x158] sm:$0xff]
    %v206 = vld [vmem:[#allocation6 + $0x160] sm:$0xff]
    %v207 = vld [vmem:[#allocation6 + $0x168] sm:$0xff]
    %v208 = vld [vmem:[#allocation6 + $0x170] sm:$0xff]
    %v209 = vld [vmem:[#allocation6 + $0x178] sm:$0xff]
    %v210 = vld [vmem:[#allocation6 + $0x180] sm:$0xff]
    %v211 = vld [vmem:[#allocation6 + $0x188] sm:$0xff]
    %v212 = vld [vmem:[#allocation6 + $0x190] sm:$0xff]
    %v213 = vld [vmem:[#allocation6 + $0x198] sm:$0xff]
    %v214 = vld [vmem:[#allocation6 + $0x1a0] sm:$0xff]
    %v215 = vld [vmem:[#allocation6 + $0x1a8] sm:$0xff]
    %v216 = vld [vmem:[#allocation6 + $0x1b0] sm:$0xff]
    %v217 = vld [vmem:[#allocation6 + $0x1b8] sm:$0xff]
    %v218 = vld [vmem:[#allocation6 + $0x1c0] sm:$0xff]
    %v219 = vld [vmem:[#allocation6 + $0x1c8] sm:$0xff]
    %v220 = vld [vmem:[#allocation6 + $0x1d0] sm:$0xff]
    %v221 = vld [vmem:[#allocation6 + $0x1d8] sm:$0xff]
    %v222 = vld [vmem:[#allocation6 + $0x1e0] sm:$0xff]
    %v223 = vld [vmem:[#allocation6 + $0x1e8] sm:$0xff]
    %v224 = vld [vmem:[#allocation6 + $0x1f0] sm:$0xff]
    %v225 = vld [vmem:[#allocation6 + $0x1f8] sm:$0xff]
    %v226 = vld [vmem:[%s5] sm:$0x3]
    %v228 = vlaneseq
    %v229 = vshrl.u32 %v228, 7
    %v230 = vsub.s32 0, %v229
    %v231 = vrot.slane %v226, %v230
    %v232 = vlaneseq
    %v233 = vshrl.u32 %v232, 7
    %v234 = vsub.s32 1, %v233
    %v235 = vrot.slane %v226, %v234
    %238 = vmatprep.subr.mxu0 %v163
    %239 = vmatpush1.msra.mxu0 %v162
    %240 = vmatprep.subr.mxu0 %v165
    %241 = vmatpush1.msra.mxu0 %v164
    %242 = vmatprep.subr.mxu0 %v167
    %243 = vmatpush1.msra.mxu0 %v166
    %244 = vmatprep.subr.mxu0 %v169
    %245 = vmatpush1.msra.mxu0 %v168
    %246 = vmatprep.subr.mxu0 %v171
    %247 = vmatpush1.msra.mxu0 %v170
    %248 = vmatprep.subr.mxu0 %v173
    %249 = vmatpush1.msra.mxu0 %v172
    %250 = vmatprep.subr.mxu0 %v175
    %251 = vmatpush1.msra.mxu0 %v174
    %252 = vmatprep.subr.mxu0 %v177
    %253 = vmatpush1.msra.mxu0 %v176
    %254 = vmatprep.subr.mxu0 %v179
    %255 = vmatpush1.msra.mxu0 %v178
    %256 = vmatprep.subr.mxu0 %v181
    %257 = vmatpush1.msra.mxu0 %v180
    %258 = vmatprep.subr.mxu0 %v183
    %259 = vmatpush1.msra.mxu0 %v182
    %260 = vmatprep.subr.mxu0 %v185
    %261 = vmatpush1.msra.mxu0 %v184
    %262 = vmatprep.subr.mxu0 %v187
    %263 = vmatpush1.msra.mxu0 %v186
    %264 = vmatprep.subr.mxu0 %v189
    %265 = vmatpush1.msra.mxu0 %v188
    %266 = vmatprep.subr.mxu0 %v191
    %267 = vmatpush1.msra.mxu0 %v190
    %268 = vmatprep.subr.mxu0 %v193
    %269 = vmatpush1.msra.mxu0 %v192
    %270 = vmatprep.subr.mxu0 %v195
    %271 = vmatpush1.msra.mxu0 %v194
    %272 = vmatprep.subr.mxu0 %v197
    %273 = vmatpush1.msra.mxu0 %v196
    %274 = vmatprep.subr.mxu0 %v199
    %275 = vmatpush1.msra.mxu0 %v198
    %276 = vmatprep.subr.mxu0 %v201
    %277 = vmatpush1.msra.mxu0 %v200
    %278 = vmatprep.subr.mxu0 %v203
    %279 = vmatpush1.msra.mxu0 %v202
    %280 = vmatprep.subr.mxu0 %v205
    %281 = vmatpush1.msra.mxu0 %v204
    %282 = vmatprep.subr.mxu0 %v207
    %283 = vmatpush1.msra.mxu0 %v206
    %284 = vmatprep.subr.mxu0 %v209
    %285 = vmatpush1.msra.mxu0 %v208
    %286 = vmatprep.subr.mxu0 %v211
    %287 = vmatpush1.msra.mxu0 %v210
    %288 = vmatprep.subr.mxu0 %v213
    %289 = vmatpush1.msra.mxu0 %v212
    %290 = vmatprep.subr.mxu0 %v215
    %291 = vmatpush1.msra.mxu0 %v214
    %292 = vmatprep.subr.mxu0 %v217
    %293 = vmatpush1.msra.mxu0 %v216
    %294 = vmatprep.subr.mxu0 %v219
    %295 = vmatpush1.msra.mxu0 %v218
    %296 = vmatprep.subr.mxu0 %v221
    %297 = vmatpush1.msra.mxu0 %v220
    %298 = vmatprep.subr.mxu0 %v223
    %299 = vmatpush1.msra.mxu0 %v222
    %300 = vmatprep.subr.mxu0 %v225
    %301 = vmatpush1.msra.mxu0 %v224
    %302 = vmatprep.mubr.f32.mxu0 %v161
    %303 = vmatmul.mubr.f32.gmra.mrb[0].mxu0 %v160
    %v304 = vpop.f32.mrb[0].mxu0
    %v305 = vadd.f32 %v231, %v304
    %v306 = vpop.f32.mrb[0].mxu0
    %v307 = vadd.f32 %v235, %v306
    %308 = vdwg.mxu0
    %v309 = vmax.f32 %v305, 0.0
    %v310 = vmax.f32 %v307, 0.0
    %v311 = vld [vmem:[%s1] sm:$0x3]
    %v312 = vld [vmem:[%s6] sm:$0xff]
    %v313 = vld [vmem:[%s6 + $0x8] sm:$0xff]
    %v314 = vld [vmem:[%s7] sm:$0x3]
    %v316 = vlaneseq
    %v317 = vshrl.u32 %v316, 7
    %v318 = vsub.s32 0, %v317
    %v319 = vrot.slane %v314, %v318
    %v320 = vlaneseq
    %v321 = vshrl.u32 %v320, 7
    %v322 = vsub.s32 1, %v321
    %v323 = vrot.slane %v314, %v322
    %vm326 = vcmask 64512
    %v328 = vsel %vm326, %v311, 0
    %330 = vmatprep.subr.mxu0 %v313
    %331 = vmatpush1.msra.mxu0 %v312
    %332 = vmatprep.subr.mxu0 0.0
    %333 = vmatpush1.msra.mxu0 0.0
    %334 = vmatprep.subr.mxu0 0.0
    %335 = vmatpush1.msra.mxu0 0.0
    %336 = vmatprep.subr.mxu0 0.0
    %337 = vmatpush1.msra.mxu0 0.0
    %338 = vmatprep.subr.mxu0 0.0
    %339 = vmatpush1.msra.mxu0 0.0
    %340 = vmatprep.subr.mxu0 0.0
    %341 = vmatpush1.msra.mxu0 0.0
    %342 = vmatprep.subr.mxu0 0.0
    %343 = vmatpush1.msra.mxu0 0.0
    %344 = vmatprep.subr.mxu0 0.0
    %345 = vmatpush1.msra.mxu0 0.0
    %346 = vmatprep.subr.mxu0 0.0
    %347 = vmatpush1.msra.mxu0 0.0
    %348 = vmatprep.subr.mxu0 0.0
    %349 = vmatpush1.msra.mxu0 0.0
    %350 = vmatprep.subr.mxu0 0.0
    %351 = vmatpush1.msra.mxu0 0.0
    %352 = vmatprep.subr.mxu0 0.0
    %353 = vmatpush1.msra.mxu0 0.0
    %354 = vmatprep.subr.mxu0 0.0
    %355 = vmatpush1.msra.mxu0 0.0
    %356 = vmatprep.subr.mxu0 0.0
    %357 = vmatpush1.msra.mxu0 0.0
    %358 = vmatprep.subr.mxu0 0.0
    %359 = vmatpush1.msra.mxu0 0.0
    %360 = vmatprep.subr.mxu0 0.0
    %361 = vmatpush1.msra.mxu0 0.0
    %362 = vmatprep.subr.mxu0 0.0
    %363 = vmatpush1.msra.mxu0 0.0
    %364 = vmatprep.subr.mxu0 0.0
    %365 = vmatpush1.msra.mxu0 0.0
    %366 = vmatprep.subr.mxu0 0.0
    %367 = vmatpush1.msra.mxu0 0.0
    %368 = vmatprep.subr.mxu0 0.0
    %369 = vmatpush1.msra.mxu0 0.0
    %370 = vmatprep.subr.mxu0 0.0
    %371 = vmatpush1.msra.mxu0 0.0
    %372 = vmatprep.subr.mxu0 0.0
    %373 = vmatpush1.msra.mxu0 0.0
    %374 = vmatprep.subr.mxu0 0.0
    %375 = vmatpush1.msra.mxu0 0.0
    %376 = vmatprep.subr.mxu0 0.0
    %377 = vmatpush1.msra.mxu0 0.0
    %378 = vmatprep.subr.mxu0 0.0
    %379 = vmatpush1.msra.mxu0 0.0
    %380 = vmatprep.subr.mxu0 0.0
    %381 = vmatpush1.msra.mxu0 0.0
    %382 = vmatprep.subr.mxu0 0.0
    %383 = vmatpush1.msra.mxu0 0.0
    %384 = vmatprep.subr.mxu0 0.0
    %385 = vmatpush1.msra.mxu0 0.0
    %386 = vmatprep.subr.mxu0 0.0
    %387 = vmatpush1.msra.mxu0 0.0
    %388 = vmatprep.subr.mxu0 0.0
    %389 = vmatpush1.msra.mxu0 0.0
    %390 = vmatprep.subr.mxu0 0.0
    %391 = vmatpush1.msra.mxu0 0.0
    %392 = vmatprep.subr.mxu0 0.0
    %393 = vmatpush1.msra.mxu0 0.0
    %394 = vmatprep.mubr.f32.mxu0 0.0
    %395 = vmatmul.mubr.f32.gmra.mrb[0].mxu0 %v328
    %v396 = vpop.f32.mrb[0].mxu0
    %v397 = vadd.f32 %v319, %v396
    %v398 = vpop.f32.mrb[0].mxu0
    %v399 = vadd.f32 %v323, %v398
    %400 = vdwg.mxu0
    %v401 = vmul.f32 %v309, %v397
    %v402 = vmul.f32 %v310, %v399
    %vm403 = vcmask 1041408
    %v404 = vsel %vm403, %v401, 0.0
    %v405 = vsel %vm403, %v402, 0.0
    %v406 = vadd.f32 %v404, %v405
    %407 = vadd.xlane.f32.xlu0 %v406
    %v408 = vpop.xlane.xlu0 %407
    %vm409 = vcmask 1024
    %410 = vst.msk [vmem:[%s8] sm:$0x3] %vm409, %v408
    // Predicated region
    $region46: #{tpu_custom_call.1} parent=1 // pred_check
      _
    $region47: #{tpu_custom_call.1} parent=1 // pred_check_branch
      %412 = sbr.rel (0) target = $region49
    $region48: #{tpu_custom_call.1} parent=1 // pred_region
      _
    $region49: #{tpu_custom_call.1} parent=1 // pred_fallthru
      _
    // Predicated region
    $region50: #{tpu_custom_call.1} parent=1 // pred_check
      _
    $region51: #{tpu_custom_call.1} parent=1 // pred_check_branch
      %414 = sbr.rel (0) target = $region53
    $region52: #{tpu_custom_call.1} parent=1 // pred_region
      _
    $region53: #{tpu_custom_call.1} parent=1 // pred_fallthru
      _
    %415 = vsyncpa [#allocation3], 1
    %416 = vsyncpa [#allocation5], 1

</llo_original>
